<compile_context>
chip_gen: v7x
topology: tpu7x:2x2x1
jax: 0.10.0
libtpu: 0.0.40
codegen_flags: <defaults>
</compile_context>

<pallas_src>
import functools

import jax
import jax.numpy as jnp
from jax.experimental import pallas as pl
from jax.experimental.pallas import tpu as pltpu


def _round_up(n, m):
    return ((n + m - 1) // m) * m


def mlp_kernel(x_ref,
               w1_ref, b1_ref,
               w2_ref, b2_ref,
               w3_ref, b3_ref,
               w4_ref, b4_ref,
               o_ref):
    # fc1 + ReLU  (bf16 operands, f32 MXU accumulation)
    h = jnp.dot(x_ref[...], w1_ref[...], preferred_element_type=jnp.float32)
    h = jnp.maximum(h + b1_ref[...], 0.0).astype(jnp.bfloat16)
    # fc2 + ReLU
    h = jnp.dot(h, w2_ref[...], preferred_element_type=jnp.float32)
    h = jnp.maximum(h + b2_ref[...], 0.0).astype(jnp.bfloat16)
    # fc3 + ReLU
    h = jnp.dot(h, w3_ref[...], preferred_element_type=jnp.float32)
    h = jnp.maximum(h + b3_ref[...], 0.0).astype(jnp.bfloat16)
    # fc4 (no activation) -- lane-dense (TB, 128) f32 store
    h = jnp.dot(h, w4_ref[...], preferred_element_type=jnp.float32)
    o_ref[...] = (h + b4_ref[...]).astype(o_ref.dtype)


def prep_params(params):
    """Zero-pad every weight/bias to 128-multiple feature dims, cast W to bf16.

    Call ONCE after loading/initializing the model and reuse the result for
    every forward call (hoisted out of the per-call path per review).
    """
    prepped = {}
    for name, (w, b) in params.items():
        d_in, d_out = w.shape
        d_in_p, d_out_p = _round_up(d_in, 128), _round_up(d_out, 128)
        w_p = jnp.zeros((d_in_p, d_out_p), jnp.float32).at[:d_in, :d_out].set(w)
        b_p = jnp.zeros((1, d_out_p), jnp.float32).at[:, :d_out].set(b)
        prepped[name] = (w_p.astype(jnp.bfloat16), b_p)  # bias stays f32
    return prepped


def _pick_batch_tile(batch, cap=512):
    """Return (padded_batch, batch_tile).  cap is a multiple of 16.

    Small batches: one grid step (per-step overhead ~0.35 us would dominate a
    split, even on v7x).  Large batches: tile at `cap` with an EVEN step
    count so v7x's two TensorCores each get balanced work.
    """
    bp = _round_up(max(batch, 1), 16)        # bf16 sublane packing
    if bp <= cap:
        return bp, bp                        # single step
    if bp <= 2 * cap:
        tb = _round_up((bp + 1) // 2, 16)    # exactly two balanced steps
        return 2 * tb, tb
    tb = cap
    steps = -(-bp // tb)
    if steps % 2:
        steps += 1                           # even step count for 2 TCs
    return steps * tb, tb


@functools.partial(jax.jit, static_argnames=("n_tags",))
def neural_net_forward(x, prepped_params, n_tags):
    """x: (B, V) float32 bag-of-words.  prepped_params: output of prep_params()."""
    B, V = x.shape
    w1, b1 = prepped_params["fc1"]
    w2, b2 = prepped_params["fc2"]
    w3, b3 = prepped_params["fc3"]
    w4, b4 = prepped_params["fc4"]

    Vp = w1.shape[0]
    Tp = w4.shape[1]

    Bp, TB = _pick_batch_tile(B)

    # Build the padded input directly in bf16 (no f32 temporary).
    x_p = jnp.zeros((Bp, Vp), jnp.bfloat16).at[:B, :V].set(x.astype(jnp.bfloat16))

    grid = (Bp // TB,)
    resident = lambda shape: pl.BlockSpec(shape, lambda i: (0, 0))  # weights stay put

    # Advisory cost estimate (padded work) so XLA schedules the call sensibly.
    flops = 2 * Bp * (w1.shape[0] * w1.shape[1] + w2.shape[0] * w2.shape[1]
                      + w3.shape[0] * w3.shape[1] + w4.shape[0] * w4.shape[1])
    param_bytes = sum(w.size * w.dtype.itemsize + b.size * b.dtype.itemsize
                      for w, b in (prepped_params[n]
                                   for n in ("fc1", "fc2", "fc3", "fc4")))
    bytes_accessed = Bp * Vp * 2 + param_bytes + Bp * Tp * 4

    out_p = pl.pallas_call(
        mlp_kernel,
        out_shape=jax.ShapeDtypeStruct((Bp, Tp), jnp.float32),
        grid=grid,
        in_specs=[
            pl.BlockSpec((TB, Vp), lambda i: (i, 0)),
            resident(w1.shape), resident(b1.shape),
            resident(w2.shape), resident(b2.shape),
            resident(w3.shape), resident(b3.shape),
            resident(w4.shape), resident(b4.shape),
        ],
        out_specs=pl.BlockSpec((TB, Tp), lambda i: (i, 0)),
        compiler_params=pltpu.CompilerParams(
            dimension_semantics=("parallel",)),
        cost_estimate=pl.CostEstimate(
            flops=flops, transcendentals=0, bytes_accessed=bytes_accessed),
    )(x_p, w1, b1, w2, b2, w3, b3, w4, b4)

    return out_p[:B, :n_tags]


def init_params(key, vocab, n_tags):
    """Deterministic synthetic init mimicking nn.Linear (uniform +-1/sqrt(in))."""
    dims = [(vocab, 200), (200, 100), (100, 50), (50, n_tags)]
    names = ["fc1", "fc2", "fc3", "fc4"]
    params = {}
    for name, (d_in, d_out) in zip(names, dims):
        key, kw, kb = jax.random.split(key, 3)
        bound = 1.0 / jnp.sqrt(jnp.float32(d_in))
        w = jax.random.uniform(kw, (d_in, d_out), jnp.float32, -bound, bound)
        b = jax.random.uniform(kb, (1, d_out), jnp.float32, -bound, bound)
        params[name] = (w, b)
    return params


def reference_forward(x, params):
    """Pure-JAX reference with matching numerics (bf16 operands, f32 accum)."""
    h = x.astype(jnp.bfloat16)
    for name in ["fc1", "fc2", "fc3"]:
        w, b = params[name]
        h = jnp.dot(h, w.astype(jnp.bfloat16),
                    preferred_element_type=jnp.float32) + b
        h = jnp.maximum(h, 0.0).astype(jnp.bfloat16)
    w, b = params["fc4"]
    return jnp.dot(h, w.astype(jnp.bfloat16),
                   preferred_element_type=jnp.float32) + b


if __name__ == "__main__":
    # The original module feeds a bag-of-words matrix of shape
    # (num_tags, len(all_words)).  Pick vocab=64, tags=16.
    VOCAB = 64
    N_TAGS = 16
    BATCH = N_TAGS  # one row per intent tag

    key = jax.random.PRNGKey(0)
    key, kx = jax.random.split(key)
    # Synthetic 0/1 bag-of-words input, float32.
    x = (jax.random.uniform(kx, (BATCH, VOCAB)) > 0.7).astype(jnp.float32)

    params = init_params(key, VOCAB, N_TAGS)

    # Hoisted, one-time parameter prep (padding + bf16 cast); reused per call.
    prepped = prep_params(params)

    out = neural_net_forward(x, prepped, N_TAGS)
    out = jax.block_until_ready(out)

    ref = reference_forward(x, params)
    assert out.shape == (BATCH, N_TAGS), out.shape
    assert jnp.allclose(out, ref, atol=2e-3, rtol=2e-3), "mismatch vs reference"

    print("KERNEL_OK")
</pallas_src>

<mosaic_0001>
module attributes {stable_mosaic.version = 11 : i64} {
  func.func @mlp_kernel(%arg0: i32, %arg1: memref<16x128xbf16, #tpu.memory_space<vmem>>, %arg2: memref<128x256xbf16, #tpu.memory_space<vmem>>, %arg3: memref<1x256xf32, #tpu.memory_space<vmem>>, %arg4: memref<256x128xbf16, #tpu.memory_space<vmem>>, %arg5: memref<1x128xf32, #tpu.memory_space<vmem>>, %arg6: memref<128x128xbf16, #tpu.memory_space<vmem>>, %arg7: memref<1x128xf32, #tpu.memory_space<vmem>>, %arg8: memref<128x128xbf16, #tpu.memory_space<vmem>>, %arg9: memref<1x128xf32, #tpu.memory_space<vmem>>, %arg10: memref<16x128xf32, #tpu.memory_space<vmem>>) attributes {dimension_semantics = [#tpu.dimension_semantics<parallel>], iteration_bounds = array<i64: 1>, scalar_prefetch = 0 : i64, scratch_operands = 0 : i64, tpu.core_type = #tpu.core_type<tc>, window_params = [{transform_indices = @transform_0, window_bounds = array<i64: 16, 128>}, {pipeline_mode = #tpu.pipeline_mode<synchronous>, transform_indices = @transform_1, window_bounds = array<i64: 128, 256>}, {pipeline_mode = #tpu.pipeline_mode<synchronous>, transform_indices = @transform_2, window_bounds = array<i64: 1, 256>}, {pipeline_mode = #tpu.pipeline_mode<synchronous>, transform_indices = @transform_3, window_bounds = array<i64: 256, 128>}, {pipeline_mode = #tpu.pipeline_mode<synchronous>, transform_indices = @transform_4, window_bounds = array<i64: 1, 128>}, {pipeline_mode = #tpu.pipeline_mode<synchronous>, transform_indices = @transform_5, window_bounds = array<i64: 128, 128>}, {pipeline_mode = #tpu.pipeline_mode<synchronous>, transform_indices = @transform_6, window_bounds = array<i64: 1, 128>}, {pipeline_mode = #tpu.pipeline_mode<synchronous>, transform_indices = @transform_7, window_bounds = array<i64: 128, 128>}, {pipeline_mode = #tpu.pipeline_mode<synchronous>, transform_indices = @transform_8, window_bounds = array<i64: 1, 128>}, {transform_indices = @transform_9, window_bounds = array<i64: 16, 128>}]} {
    %c0 = arith.constant 0 : index
    %c0_0 = arith.constant 0 : index
    %0 = vector.load %arg1[%c0, %c0_0] : memref<16x128xbf16, #tpu.memory_space<vmem>>, vector<16x128xbf16>
    %c0_1 = arith.constant 0 : index
    %c0_2 = arith.constant 0 : index
    %1 = vector.load %arg2[%c0_1, %c0_2] : memref<128x256xbf16, #tpu.memory_space<vmem>>, vector<128x256xbf16>
    %cst = arith.constant dense<0.000000e+00> : vector<16x256xf32>
    %2 = tpu.matmul %0, %1, %cst {dimension_numbers = #tpu.dot_dimension_numbers<[1], [0], [0], [1], [0, 0, 1, 1], [], []>} : vector<16x128xbf16>, vector<128x256xbf16>, vector<16x256xf32> -> vector<16x256xf32>
    %c0_3 = arith.constant 0 : index
    %c0_4 = arith.constant 0 : index
    %3 = vector.load %arg3[%c0_3, %c0_4] : memref<1x256xf32, #tpu.memory_space<vmem>>, vector<1x256xf32>
    %4 = vector.broadcast %3 : vector<1x256xf32> to vector<16x256xf32>
    %5 = arith.addf %2, %4 : vector<16x256xf32>
    %cst_5 = arith.constant 0.000000e+00 : f32
    %6 = vector.broadcast %cst_5 : f32 to vector<16x256xf32>
    %7 = arith.maximumf %5, %6 : vector<16x256xf32>
    %8 = arith.truncf %7 : vector<16x256xf32> to vector<16x256xbf16>
    %c0_6 = arith.constant 0 : index
    %c0_7 = arith.constant 0 : index
    %9 = vector.load %arg4[%c0_6, %c0_7] : memref<256x128xbf16, #tpu.memory_space<vmem>>, vector<256x128xbf16>
    %cst_8 = arith.constant dense<0.000000e+00> : vector<16x128xf32>
    %10 = tpu.matmul %8, %9, %cst_8 {dimension_numbers = #tpu.dot_dimension_numbers<[1], [0], [0], [1], [0, 0, 1, 1], [], []>} : vector<16x256xbf16>, vector<256x128xbf16>, vector<16x128xf32> -> vector<16x128xf32>
    %c0_9 = arith.constant 0 : index
    %c0_10 = arith.constant 0 : index
    %11 = vector.load %arg5[%c0_9, %c0_10] : memref<1x128xf32, #tpu.memory_space<vmem>>, vector<1x128xf32>
    %12 = vector.broadcast %11 : vector<1x128xf32> to vector<16x128xf32>
    %13 = arith.addf %10, %12 : vector<16x128xf32>
    %cst_11 = arith.constant 0.000000e+00 : f32
    %14 = vector.broadcast %cst_11 : f32 to vector<16x128xf32>
    %15 = arith.maximumf %13, %14 : vector<16x128xf32>
    %16 = arith.truncf %15 : vector<16x128xf32> to vector<16x128xbf16>
    %c0_12 = arith.constant 0 : index
    %c0_13 = arith.constant 0 : index
    %17 = vector.load %arg6[%c0_12, %c0_13] : memref<128x128xbf16, #tpu.memory_space<vmem>>, vector<128x128xbf16>
    %cst_14 = arith.constant dense<0.000000e+00> : vector<16x128xf32>
    %18 = tpu.matmul %16, %17, %cst_14 {dimension_numbers = #tpu.dot_dimension_numbers<[1], [0], [0], [1], [0, 0, 1, 1], [], []>} : vector<16x128xbf16>, vector<128x128xbf16>, vector<16x128xf32> -> vector<16x128xf32>
    %c0_15 = arith.constant 0 : index
    %c0_16 = arith.constant 0 : index
    %19 = vector.load %arg7[%c0_15, %c0_16] : memref<1x128xf32, #tpu.memory_space<vmem>>, vector<1x128xf32>
    %20 = vector.broadcast %19 : vector<1x128xf32> to vector<16x128xf32>
    %21 = arith.addf %18, %20 : vector<16x128xf32>
    %cst_17 = arith.constant 0.000000e+00 : f32
    %22 = vector.broadcast %cst_17 : f32 to vector<16x128xf32>
    %23 = arith.maximumf %21, %22 : vector<16x128xf32>
    %24 = arith.truncf %23 : vector<16x128xf32> to vector<16x128xbf16>
    %c0_18 = arith.constant 0 : index
    %c0_19 = arith.constant 0 : index
    %25 = vector.load %arg8[%c0_18, %c0_19] : memref<128x128xbf16, #tpu.memory_space<vmem>>, vector<128x128xbf16>
    %cst_20 = arith.constant dense<0.000000e+00> : vector<16x128xf32>
    %26 = tpu.matmul %24, %25, %cst_20 {dimension_numbers = #tpu.dot_dimension_numbers<[1], [0], [0], [1], [0, 0, 1, 1], [], []>} : vector<16x128xbf16>, vector<128x128xbf16>, vector<16x128xf32> -> vector<16x128xf32>
    %c0_21 = arith.constant 0 : index
    %c0_22 = arith.constant 0 : index
    %27 = vector.load %arg9[%c0_21, %c0_22] : memref<1x128xf32, #tpu.memory_space<vmem>>, vector<1x128xf32>
    %28 = vector.broadcast %27 : vector<1x128xf32> to vector<16x128xf32>
    %29 = arith.addf %26, %28 : vector<16x128xf32>
    %c0_23 = arith.constant 0 : index
    %c0_24 = arith.constant 0 : index
    %30 = vector.load %arg10[%c0_23, %c0_24] : memref<16x128xf32, #tpu.memory_space<vmem>>, vector<16x128xf32>
    tpu.vector_store %arg10[%c0_23, %c0_24], %29 {strides = array<i32>} : memref<16x128xf32, #tpu.memory_space<vmem>>, vector<16x128xf32>,
    return
  }
  func.func @transform_0(%arg0: i32) -> (i32, i32) {
    %c0_i32 = arith.constant 0 : i32
    %c0_i32_0 = arith.constant 0 : i32
    return %arg0, %c0_i32 : i32, i32
  }
  func.func @transform_1(%arg0: i32) -> (i32, i32) {
    %c0_i32 = arith.constant 0 : i32
    %c0_i32_0 = arith.constant 0 : i32
    %c0_i32_1 = arith.constant 0 : i32
    return %c0_i32, %c0_i32_0 : i32, i32
  }
  func.func @transform_2(%arg0: i32) -> (i32, i32) {
    %c0_i32 = arith.constant 0 : i32
    %c0_i32_0 = arith.constant 0 : i32
    %c0_i32_1 = arith.constant 0 : i32
    return %c0_i32, %c0_i32_0 : i32, i32
  }
  func.func @transform_3(%arg0: i32) -> (i32, i32) {
    %c0_i32 = arith.constant 0 : i32
    %c0_i32_0 = arith.constant 0 : i32
    %c0_i32_1 = arith.constant 0 : i32
    return %c0_i32, %c0_i32_0 : i32, i32
  }
  func.func @transform_4(%arg0: i32) -> (i32, i32) {
    %c0_i32 = arith.constant 0 : i32
    %c0_i32_0 = arith.constant 0 : i32
    %c0_i32_1 = arith.constant 0 : i32
    return %c0_i32, %c0_i32_0 : i32, i32
  }
  func.func @transform_5(%arg0: i32) -> (i32, i32) {
    %c0_i32 = arith.constant 0 : i32
    %c0_i32_0 = arith.constant 0 : i32
    %c0_i32_1 = arith.constant 0 : i32
    return %c0_i32, %c0_i32_0 : i32, i32
  }
  func.func @transform_6(%arg0: i32) -> (i32, i32) {
    %c0_i32 = arith.constant 0 : i32
    %c0_i32_0 = arith.constant 0 : i32
    %c0_i32_1 = arith.constant 0 : i32
    return %c0_i32, %c0_i32_0 : i32, i32
  }
  func.func @transform_7(%arg0: i32) -> (i32, i32) {
    %c0_i32 = arith.constant 0 : i32
    %c0_i32_0 = arith.constant 0 : i32
    %c0_i32_1 = arith.constant 0 : i32
    return %c0_i32, %c0_i32_0 : i32, i32
  }
  func.func @transform_8(%arg0: i32) -> (i32, i32) {
    %c0_i32 = arith.constant 0 : i32
    %c0_i32_0 = arith.constant 0 : i32
    %c0_i32_1 = arith.constant 0 : i32
    return %c0_i32, %c0_i32_0 : i32, i32
  }
  func.func @transform_9(%arg0: i32) -> (i32, i32) {
    %c0_i32 = arith.constant 0 : i32
    %c0_i32_0 = arith.constant 0 : i32
    return %arg0, %c0_i32 : i32, i32
  }
}

</mosaic_0001>

<llo_original>
// kernel: neural_net_forward.1
$region0: #{neural_net_forward.1}
  #allocation0 [shape = 'u32[]', space=smem, size = 0x4, offset = 0x4, fixed_abs, tag = 'smem constant byte address 0x4 - core index']
  #allocation1 [shape = 'u32[144,128]{1,0:T(1,128)}', space=vmem, size = 0x12000, scoped, tag = 'internal scratch']
  %s0 = inlined_call_operand.vmem [shape: bf16[16,128], index: 0, kind: input, shape index: {}]
  %s1 = inlined_call_operand.hbm [shape: bf16[128,256], index: 1, kind: input, shape index: {}]
  %s2 = inlined_call_operand.hbm [shape: f32[1,256], index: 2, kind: input, shape index: {}]
  %s3 = inlined_call_operand.hbm [shape: bf16[256,128], index: 3, kind: input, shape index: {}]
  %s4 = inlined_call_operand.hbm [shape: f32[1,128], index: 4, kind: input, shape index: {}]
  %s5 = inlined_call_operand.vmem [shape: bf16[128,128], index: 5, kind: input, shape index: {}]
  %s6 = inlined_call_operand.vmem [shape: f32[1,128], index: 6, kind: input, shape index: {}]
  %s7 = inlined_call_operand.hbm [shape: bf16[128,128], index: 7, kind: input, shape index: {}]
  %s8 = inlined_call_operand.vmem [shape: f32[1,128], index: 8, kind: input, shape index: {}]
  %s9 = inlined_call_operand.hbm [shape: f32[16,128], index: 9, kind: output, shape index: {}]
  %s10 = sld [smem:[#allocation0]]
  $region66: #{neural_net_forward.1} parent=0
    _
  %s12 = ssub.s32 1, %s10
  %s13 = scalar_select 0, %s12, %s10
  $region1: #{neural_net_forward.1} parent=0
    #allocation2 [shape = 'u8[65536]{0}', space=vmem, size = 0x10000, scoped, tag = 'input window, operand 1, single buffered']
    #allocation3 [shape = 's32[1]{0}', space=sflag, size = 0x4, scoped, tag = 'scoped memory for neural_net_forward.1']
    #allocation4 [shape = 's32[1]{0}', space=sflag, size = 0x4, scoped, tag = 'scoped memory for neural_net_forward.1']
    #allocation5 [shape = 'u8[1024]{0}', space=vmem, size = 0x400, scoped, tag = 'input window, operand 2, single buffered']
    #allocation6 [shape = 's32[1]{0}', space=sflag, size = 0x4, scoped, tag = 'scoped memory for neural_net_forward.1']
    #allocation7 [shape = 'u8[65536]{0}', space=vmem, size = 0x10000, scoped, tag = 'input window, operand 3, single buffered']
    #allocation8 [shape = 'u8[512]{0}', space=vmem, size = 0x400, scoped, tag = 'input window, operand 4, single buffered']
    #allocation9 [shape = 's32[1]{0}', space=sflag, size = 0x4, scoped, tag = 'scoped memory for neural_net_forward.1']
    #allocation10 [shape = 'u8[32768]{0}', space=vmem, size = 0x8000, scoped, tag = 'input window, operand 7, single buffered']
    #allocation11 [shape = 'u8[8192]{0}', space=vmem, size = 0x2000, scoped, tag = 'output window, operand 0, single buffered']
    %14 = vsyncpa [#allocation3], 0
    %15 = vsyncpa [#allocation6], 0
    %16 = vsyncpa [#allocation9], 0
    %17 = vsyncpa [#allocation4], 0
    // Predicated region
    $region2: #{neural_net_forward.1} parent=1 // pred_check
      _
    $region3: #{neural_net_forward.1} parent=1 // pred_check_branch
      %19 = sbr.rel (0) target = $region5
    $region4: #{neural_net_forward.1} parent=1 // pred_region
      _
    $region5: #{neural_net_forward.1} parent=1 // pred_fallthru
      _
    // Predicated region
    $region6: #{neural_net_forward.1} parent=1 // pred_check
      _
    $region7: #{neural_net_forward.1} parent=1 // pred_check_branch
      %21 = sbr.rel (0) target = $region9
    $region8: #{neural_net_forward.1} parent=1 // pred_region
      %s23 = ssub.s32 2048, 2048
      %24 = vsyncadd [#allocation3], %s23
      %s25 = sshll.u32 [#allocation2], 4
      %s26 = int_to_ptr.vmem [resolvable:$true] %s25
      %31 = dma.hbm_to_vmem [thread:$0]  %s1, 2048, %s26, [#allocation3], 128, 128, 8
    $region9: #{neural_net_forward.1} parent=1 // pred_fallthru
      _
    // Predicated region
    $region10: #{neural_net_forward.1} parent=1 // pred_check
      _
    $region11: #{neural_net_forward.1} parent=1 // pred_check_branch
      %33 = sbr.rel (0) target = $region13
    $region12: #{neural_net_forward.1} parent=1 // pred_region
      %s35 = ssub.s32 32, 32
      %36 = vsyncadd [#allocation6], %s35
      %s38 = sshll.u32 [#allocation5], 4
      %s39 = int_to_ptr.vmem [resolvable:$true] %s38
      %41 = dma.hbm_to_vmem [thread:$0]  %s2, 32, %s39, [#allocation6]
    $region13: #{neural_net_forward.1} parent=1 // pred_fallthru
      _
    // Predicated region
    $region14: #{neural_net_forward.1} parent=1 // pred_check
      _
    $region15: #{neural_net_forward.1} parent=1 // pred_check_branch
      %43 = sbr.rel (0) target = $region17
    $region16: #{neural_net_forward.1} parent=1 // pred_region
      %s45 = ssub.s32 2048, 2048
      %46 = vsyncadd [#allocation6], %s45
      %s47 = sshll.u32 [#allocation7], 4
      %s48 = int_to_ptr.vmem [resolvable:$true] %s47
      %53 = dma.hbm_to_vmem [thread:$0]  %s3, 2048, %s48, [#allocation6], 64, 64, 4
    $region17: #{neural_net_forward.1} parent=1 // pred_fallthru
      _
    // Predicated region
    $region18: #{neural_net_forward.1} parent=1 // pred_check
      _
    $region19: #{neural_net_forward.1} parent=1 // pred_check_branch
      %55 = sbr.rel (0) target = $region21
    $region20: #{neural_net_forward.1} parent=1 // pred_region
      %s57 = ssub.s32 16, 16
      %58 = vsyncadd [#allocation9], %s57
      %s60 = sshll.u32 [#allocation8], 4
      %s61 = int_to_ptr.vmem [resolvable:$true] %s60
      %63 = dma.hbm_to_vmem [thread:$0]  %s4, 16, %s61, [#allocation9]
    $region21: #{neural_net_forward.1} parent=1 // pred_fallthru
      _
    // Predicated region
    $region22: #{neural_net_forward.1} parent=1 // pred_check
      _
    $region23: #{neural_net_forward.1} parent=1 // pred_check_branch
      %65 = sbr.rel (0) target = $region25
    $region24: #{neural_net_forward.1} parent=1 // pred_region
      _
    $region25: #{neural_net_forward.1} parent=1 // pred_fallthru
      _
    // Predicated region
    $region26: #{neural_net_forward.1} parent=1 // pred_check
      _
    $region27: #{neural_net_forward.1} parent=1 // pred_check_branch
      %67 = sbr.rel (0) target = $region29
    $region28: #{neural_net_forward.1} parent=1 // pred_region
      _
    $region29: #{neural_net_forward.1} parent=1 // pred_fallthru
      _
    // Predicated region
    $region30: #{neural_net_forward.1} parent=1 // pred_check
      _
    $region31: #{neural_net_forward.1} parent=1 // pred_check_branch
      %69 = sbr.rel (0) target = $region33
    $region32: #{neural_net_forward.1} parent=1 // pred_region
      %s71 = ssub.s32 1024, 1024
      %72 = vsyncadd [#allocation9], %s71
      %s73 = sshll.u32 [#allocation10], 4
      %s74 = int_to_ptr.vmem [resolvable:$true] %s73
      %79 = dma.hbm_to_vmem [thread:$0]  %s7, 1024, %s74, [#allocation9], 64, 64, 4
    $region33: #{neural_net_forward.1} parent=1 // pred_fallthru
      _
    // Predicated region
    $region34: #{neural_net_forward.1} parent=1 // pred_check
      _
    $region35: #{neural_net_forward.1} parent=1 // pred_check_branch
      %81 = sbr.rel (0) target = $region37
    $region36: #{neural_net_forward.1} parent=1 // pred_region
      _
    $region37: #{neural_net_forward.1} parent=1 // pred_fallthru
      _
    // Predicated region
    $region38: #{neural_net_forward.1} parent=1 // pred_check
      _
    $region39: #{neural_net_forward.1} parent=1 // pred_check_branch
      %83 = sbr.rel (0) target = $region41
    $region40: #{neural_net_forward.1} parent=1 // pred_region
      %84 = dma.done [#allocation3], 2048
    $region41: #{neural_net_forward.1} parent=1 // pred_fallthru
      _
    // Predicated region
    $region42: #{neural_net_forward.1} parent=1 // pred_check
      _
    $region43: #{neural_net_forward.1} parent=1 // pred_check_branch
      %86 = sbr.rel (0) target = $region45
    $region44: #{neural_net_forward.1} parent=1 // pred_region
      %87 = dma.done [#allocation6], 32
    $region45: #{neural_net_forward.1} parent=1 // pred_fallthru
      _
    // Predicated region
    $region46: #{neural_net_forward.1} parent=1 // pred_check
      _
    $region47: #{neural_net_forward.1} parent=1 // pred_check_branch
      %89 = sbr.rel (0) target = $region49
    $region48: #{neural_net_forward.1} parent=1 // pred_region
      %90 = dma.done [#allocation6], 2048
    $region49: #{neural_net_forward.1} parent=1 // pred_fallthru
      _
    // Predicated region
    $region50: #{neural_net_forward.1} parent=1 // pred_check
      _
    $region51: #{neural_net_forward.1} parent=1 // pred_check_branch
      %92 = sbr.rel (0) target = $region53
    $region52: #{neural_net_forward.1} parent=1 // pred_region
      %93 = dma.done [#allocation9], 16
    $region53: #{neural_net_forward.1} parent=1 // pred_fallthru
      _
    // Predicated region
    $region54: #{neural_net_forward.1} parent=1 // pred_check
      _
    $region55: #{neural_net_forward.1} parent=1 // pred_check_branch
      %95 = sbr.rel (0) target = $region57
    $region56: #{neural_net_forward.1} parent=1 // pred_region
      %96 = dma.done [#allocation9], 1024
    $region57: #{neural_net_forward.1} parent=1 // pred_fallthru
      _
    %v98 = vld [vmem:[%s0] sm:$0xf]
    %v99 = vld [vmem:[%s0 + $0x4] sm:$0xf]
    %v100 = vld [vmem:[#allocation2] sm:$0xff]
    %v101 = vld [vmem:[#allocation2 + $0x8] sm:$0xff]
    %v102 = vld [vmem:[#allocation2 + $0x10] sm:$0xff]
    %v103 = vld [vmem:[#allocation2 + $0x18] sm:$0xff]
    %v104 = vld [vmem:[#allocation2 + $0x20] sm:$0xff]
    %v105 = vld [vmem:[#allocation2 + $0x28] sm:$0xff]
    %v106 = vld [vmem:[#allocation2 + $0x30] sm:$0xff]
    %v107 = vld [vmem:[#allocation2 + $0x38] sm:$0xff]
    %v108 = vld [vmem:[#allocation2 + $0x40] sm:$0xff]
    %v109 = vld [vmem:[#allocation2 + $0x48] sm:$0xff]
    %v110 = vld [vmem:[#allocation2 + $0x50] sm:$0xff]
    %v111 = vld [vmem:[#allocation2 + $0x58] sm:$0xff]
    %v112 = vld [vmem:[#allocation2 + $0x60] sm:$0xff]
    %v113 = vld [vmem:[#allocation2 + $0x68] sm:$0xff]
    %v114 = vld [vmem:[#allocation2 + $0x70] sm:$0xff]
    %v115 = vld [vmem:[#allocation2 + $0x78] sm:$0xff]
    %v116 = vld [vmem:[#allocation5] sm:$0x3]
    %v118 = vlaneseq
    %v119 = vshrl.u32 %v118, 7
    %v120 = vsub.s32 0, %v119
    %v121 = vrot.slane %v116, %v120
    %v122 = vlaneseq
    %v123 = vshrl.u32 %v122, 7
    %v124 = vsub.s32 1, %v123
    %v125 = vrot.slane %v116, %v124
    %v130 = vunpack.c.l.b16 %v98
    %v131 = vunpack.c.l.b16 %v99
    %v132 = vpack.c.b16 %v131, %v130
    %v150 = vunpack.c.l.b16 %v100
    %v151 = vunpack.c.h.b16 %v100
    %v152 = vunpack.c.l.b16 %v101
    %v153 = vunpack.c.h.b16 %v101
    %v154 = vunpack.c.l.b16 %v102
    %v155 = vunpack.c.h.b16 %v102
    %v156 = vunpack.c.l.b16 %v103
    %v157 = vunpack.c.h.b16 %v103
    %v158 = vunpack.c.l.b16 %v104
    %v159 = vunpack.c.h.b16 %v104
    %v160 = vunpack.c.l.b16 %v105
    %v161 = vunpack.c.h.b16 %v105
    %v162 = vunpack.c.l.b16 %v106
    %v163 = vunpack.c.h.b16 %v106
    %v164 = vunpack.c.l.b16 %v107
    %v165 = vunpack.c.h.b16 %v107
    %v166 = vunpack.c.l.b16 %v108
    %v167 = vunpack.c.h.b16 %v108
    %v168 = vunpack.c.l.b16 %v109
    %v169 = vunpack.c.h.b16 %v109
    %v170 = vunpack.c.l.b16 %v110
    %v171 = vunpack.c.h.b16 %v110
    %v172 = vunpack.c.l.b16 %v111
    %v173 = vunpack.c.h.b16 %v111
    %v174 = vunpack.c.l.b16 %v112
    %v175 = vunpack.c.h.b16 %v112
    %v176 = vunpack.c.l.b16 %v113
    %v177 = vunpack.c.h.b16 %v113
    %v178 = vunpack.c.l.b16 %v114
    %v179 = vunpack.c.h.b16 %v114
    %v180 = vunpack.c.l.b16 %v115
    %v181 = vunpack.c.h.b16 %v115
    %v182 = vpack.c.b16 %v152, %v150
    %v183 = vpack.c.b16 %v153, %v151
    %v184 = vpack.c.b16 %v156, %v154
    %v185 = vpack.c.b16 %v157, %v155
    %v186 = vpack.c.b16 %v160, %v158
    %v187 = vpack.c.b16 %v161, %v159
    %v188 = vpack.c.b16 %v164, %v162
    %v189 = vpack.c.b16 %v165, %v163
    %v190 = vpack.c.b16 %v168, %v166
    %v191 = vpack.c.b16 %v169, %v167
    %v192 = vpack.c.b16 %v172, %v170
    %v193 = vpack.c.b16 %v173, %v171
    %v194 = vpack.c.b16 %v176, %v174
    %v195 = vpack.c.b16 %v177, %v175
    %v196 = vpack.c.b16 %v180, %v178
    %v197 = vpack.c.b16 %v181, %v179
    %214 = vmatprep.subr.bf16.mxu0 %v183
    %215 = vmatpush1.bf16.msra.mxu0 %v182
    %216 = vmatprep.subr.bf16.mxu0 %v185
    %217 = vmatpush1.bf16.msra.mxu0 %v184
    %218 = vmatprep.subr.bf16.mxu0 %v187
    %219 = vmatpush1.bf16.msra.mxu0 %v186
    %220 = vmatprep.subr.bf16.mxu0 %v189
    %221 = vmatpush1.bf16.msra.mxu0 %v188
    %222 = vmatprep.subr.bf16.mxu0 %v191
    %223 = vmatpush1.bf16.msra.mxu0 %v190
    %224 = vmatprep.subr.bf16.mxu0 %v193
    %225 = vmatpush1.bf16.msra.mxu0 %v192
    %226 = vmatprep.subr.bf16.mxu0 %v195
    %227 = vmatpush1.bf16.msra.mxu0 %v194
    %228 = vmatprep.subr.bf16.mxu0 %v197
    %229 = vmatpush1.bf16.msra.mxu0 %v196
    %230 = vmatprep.subr.bf16.mxu0 0
    %231 = vmatpush1.bf16.msra.mxu0 0
    %232 = vmatprep.subr.bf16.mxu0 0
    %233 = vmatpush1.bf16.msra.mxu0 0
    %234 = vmatprep.subr.bf16.mxu0 0
    %235 = vmatpush1.bf16.msra.mxu0 0
    %236 = vmatprep.subr.bf16.mxu0 0
    %237 = vmatpush1.bf16.msra.mxu0 0
    %238 = vmatprep.subr.bf16.mxu0 0
    %239 = vmatpush1.bf16.msra.mxu0 0
    %240 = vmatprep.subr.bf16.mxu0 0
    %241 = vmatpush1.bf16.msra.mxu0 0
    %242 = vmatprep.subr.bf16.mxu0 0
    %243 = vmatpush1.bf16.msra.mxu0 0
    %244 = vmatprep.subr.bf16.mxu0 0
    %245 = vmatpush1.bf16.msra.mxu0 0
    %246 = vmatprep.mubr.bf16.mxu0 0
    %247 = vmatmul.mubr.bf16.gmra.mrb[0].mxu0 %v132
    %v248 = vpop.f32.mrb[0].mxu0
    %v249 = vadd.f32 %v121, %v248
    %v250 = vpop.f32.mrb[0].mxu0
    %v251 = vadd.f32 %v125, %v250
    %v252 = vpop.f32.mrb[0].mxu0
    %v253 = vadd.f32 %v121, %v252
    %v254 = vpop.f32.mrb[0].mxu0
    %v255 = vadd.f32 %v125, %v254
    %256 = vdwg.mxu0
    %v257 = vmax.f32 %v249, 0.0
    %v258 = vmax.f32 %v251, 0.0
    %v259 = vmax.f32 %v253, 0.0
    %v260 = vmax.f32 %v255, 0.0
    %v261 = vpack.c.bf16 %v259, %v257
    %v262 = vpack.c.bf16 %v260, %v258
    %v263 = vld [vmem:[#allocation7] sm:$0xf]
    %v264 = vld [vmem:[#allocation7 + $0x4] sm:$0xf]
    %v265 = vld [vmem:[#allocation7 + $0x8] sm:$0xf]
    %v266 = vld [vmem:[#allocation7 + $0xc] sm:$0xf]
    %v267 = vld [vmem:[#allocation7 + $0x10] sm:$0xf]
    %v268 = vld [vmem:[#allocation7 + $0x14] sm:$0xf]
    %v269 = vld [vmem:[#allocation7 + $0x18] sm:$0xf]
    %v270 = vld [vmem:[#allocation7 + $0x1c] sm:$0xf]
    %v271 = vld [vmem:[#allocation7 + $0x20] sm:$0xf]
    %v272 = vld [vmem:[#allocation7 + $0x24] sm:$0xf]
    %v273 = vld [vmem:[#allocation7 + $0x28] sm:$0xf]
    %v274 = vld [vmem:[#allocation7 + $0x2c] sm:$0xf]
    %v275 = vld [vmem:[#allocation7 + $0x30] sm:$0xf]
    %v276 = vld [vmem:[#allocation7 + $0x34] sm:$0xf]
    %v277 = vld [vmem:[#allocation7 + $0x38] sm:$0xf]
    %v278 = vld [vmem:[#allocation7 + $0x3c] sm:$0xf]
    %v279 = vld [vmem:[#allocation7 + $0x40] sm:$0xf]
    %v280 = vld [vmem:[#allocation7 + $0x44] sm:$0xf]
    %v281 = vld [vmem:[#allocation7 + $0x48] sm:$0xf]
    %v282 = vld [vmem:[#allocation7 + $0x4c] sm:$0xf]
    %v283 = vld [vmem:[#allocation7 + $0x50] sm:$0xf]
    %v284 = vld [vmem:[#allocation7 + $0x54] sm:$0xf]
    %v285 = vld [vmem:[#allocation7 + $0x58] sm:$0xf]
    %v286 = vld [vmem:[#allocation7 + $0x5c] sm:$0xf]
    %v287 = vld [vmem:[#allocation7 + $0x60] sm:$0xf]
    %v288 = vld [vmem:[#allocation7 + $0x64] sm:$0xf]
    %v289 = vld [vmem:[#allocation7 + $0x68] sm:$0xf]
    %v290 = vld [vmem:[#allocation7 + $0x6c] sm:$0xf]
    %v291 = vld [vmem:[#allocation7 + $0x70] sm:$0xf]
    %v292 = vld [vmem:[#allocation7 + $0x74] sm:$0xf]
    %v293 = vld [vmem:[#allocation7 + $0x78] sm:$0xf]
    %v294 = vld [vmem:[#allocation7 + $0x7c] sm:$0xf]
    %v295 = vld [vmem:[#allocation8] sm:$0x1]
    %v297 = vlaneseq
    %v298 = vshrl.u32 %v297, 7
    %v299 = vsub.s32 0, %v298
    %v300 = vrot.slane %v295, %v299
    %v334 = vunpack.c.l.b16 %v263
    %v335 = vunpack.c.l.b16 %v264
    %v336 = vunpack.c.l.b16 %v265
    %v337 = vunpack.c.l.b16 %v266
    %v338 = vunpack.c.l.b16 %v267
    %v339 = vunpack.c.l.b16 %v268
    %v340 = vunpack.c.l.b16 %v269
    %v341 = vunpack.c.l.b16 %v270
    %v342 = vunpack.c.l.b16 %v271
    %v343 = vunpack.c.l.b16 %v272
    %v344 = vunpack.c.l.b16 %v273
    %v345 = vunpack.c.l.b16 %v274
    %v346 = vunpack.c.l.b16 %v275
    %v347 = vunpack.c.l.b16 %v276
    %v348 = vunpack.c.l.b16 %v277
    %v349 = vunpack.c.l.b16 %v278
    %v350 = vunpack.c.l.b16 %v279
    %v351 = vunpack.c.l.b16 %v280
    %v352 = vunpack.c.l.b16 %v281
    %v353 = vunpack.c.l.b16 %v282
    %v354 = vunpack.c.l.b16 %v283
    %v355 = vunpack.c.l.b16 %v284
    %v356 = vunpack.c.l.b16 %v285
    %v357 = vunpack.c.l.b16 %v286
    %v358 = vunpack.c.l.b16 %v287
    %v359 = vunpack.c.l.b16 %v288
    %v360 = vunpack.c.l.b16 %v289
    %v361 = vunpack.c.l.b16 %v290
    %v362 = vunpack.c.l.b16 %v291
    %v363 = vunpack.c.l.b16 %v292
    %v364 = vunpack.c.l.b16 %v293
    %v365 = vunpack.c.l.b16 %v294
    %v366 = vpack.c.b16 %v335, %v334
    %v367 = vpack.c.b16 %v337, %v336
    %v368 = vpack.c.b16 %v339, %v338
    %v369 = vpack.c.b16 %v341, %v340
    %v370 = vpack.c.b16 %v343, %v342
    %v371 = vpack.c.b16 %v345, %v344
    %v372 = vpack.c.b16 %v347, %v346
    %v373 = vpack.c.b16 %v349, %v348
    %v374 = vpack.c.b16 %v351, %v350
    %v375 = vpack.c.b16 %v353, %v352
    %v376 = vpack.c.b16 %v355, %v354
    %v377 = vpack.c.b16 %v357, %v356
    %v378 = vpack.c.b16 %v359, %v358
    %v379 = vpack.c.b16 %v361, %v360
    %v380 = vpack.c.b16 %v363, %v362
    %v381 = vpack.c.b16 %v365, %v364
    %398 = vmatprep.subr.bf16.mxu0 0
    %399 = vmatpush1.bf16.msra.mxu0 %v366
    %400 = vmatprep.subr.bf16.mxu0 0
    %401 = vmatpush1.bf16.msra.mxu0 %v367
    %402 = vmatprep.subr.bf16.mxu0 0
    %403 = vmatpush1.bf16.msra.mxu0 %v368
    %404 = vmatprep.subr.bf16.mxu0 0
    %405 = vmatpush1.bf16.msra.mxu0 %v369
    %406 = vmatprep.subr.bf16.mxu0 0
    %407 = vmatpush1.bf16.msra.mxu0 %v370
    %408 = vmatprep.subr.bf16.mxu0 0
    %409 = vmatpush1.bf16.msra.mxu0 %v371
    %410 = vmatprep.subr.bf16.mxu0 0
    %411 = vmatpush1.bf16.msra.mxu0 %v372
    %412 = vmatprep.subr.bf16.mxu0 0
    %413 = vmatpush1.bf16.msra.mxu0 %v373
    %414 = vmatprep.subr.bf16.mxu0 0
    %415 = vmatpush1.bf16.msra.mxu0 %v374
    %416 = vmatprep.subr.bf16.mxu0 0
    %417 = vmatpush1.bf16.msra.mxu0 %v375
    %418 = vmatprep.subr.bf16.mxu0 0
    %419 = vmatpush1.bf16.msra.mxu0 %v376
    %420 = vmatprep.subr.bf16.mxu0 0
    %421 = vmatpush1.bf16.msra.mxu0 %v377
    %422 = vmatprep.subr.bf16.mxu0 0
    %423 = vmatpush1.bf16.msra.mxu0 %v378
    %424 = vmatprep.subr.bf16.mxu0 0
    %425 = vmatpush1.bf16.msra.mxu0 %v379
    %426 = vmatprep.subr.bf16.mxu0 0
    %427 = vmatpush1.bf16.msra.mxu0 %v380
    %428 = vmatprep.subr.bf16.mxu0 0
    %429 = vmatpush1.bf16.msra.mxu0 %v381
    %430 = vmatprep.mubr.bf16.mxu0 %v262
    %431 = vmatmul.mubr.bf16.gmra.mrb[0].mxu0 %v261
    %v432 = vpop.f32.mrb[0].mxu0
    %v433 = vadd.f32 %v300, %v432
    %v434 = vpop.f32.mrb[0].mxu0
    %v435 = vpop.f32.mrb[0].mxu0
    %v436 = vadd.f32 %v300, %v435
    %v437 = vpop.f32.mrb[0].mxu0
    %438 = vdwg.mxu0
    %v439 = vmax.f32 %v433, 0.0
    %v440 = vmax.f32 %v436, 0.0
    %v441 = vpack.c.bf16 %v440, %v439
    %v442 = vld [vmem:[%s5] sm:$0xf]
    %v443 = vld [vmem:[%s5 + $0x4] sm:$0xf]
    %v444 = vld [vmem:[%s5 + $0x8] sm:$0xf]
    %v445 = vld [vmem:[%s5 + $0xc] sm:$0xf]
    %v446 = vld [vmem:[%s5 + $0x10] sm:$0xf]
    %v447 = vld [vmem:[%s5 + $0x14] sm:$0xf]
    %v448 = vld [vmem:[%s5 + $0x18] sm:$0xf]
    %v449 = vld [vmem:[%s5 + $0x1c] sm:$0xf]
    %v450 = vld [vmem:[%s5 + $0x20] sm:$0xf]
    %v451 = vld [vmem:[%s5 + $0x24] sm:$0xf]
    %v452 = vld [vmem:[%s5 + $0x28] sm:$0xf]
    %v453 = vld [vmem:[%s5 + $0x2c] sm:$0xf]
    %v454 = vld [vmem:[%s5 + $0x30] sm:$0xf]
    %v455 = vld [vmem:[%s5 + $0x34] sm:$0xf]
    %v456 = vld [vmem:[%s5 + $0x38] sm:$0xf]
    %v457 = vld [vmem:[%s5 + $0x3c] sm:$0xf]
    %v458 = vld [vmem:[%s6] sm:$0x1]
    %v460 = vlaneseq
    %v461 = vshrl.u32 %v460, 7
    %v462 = vsub.s32 0, %v461
    %v463 = vrot.slane %v458, %v462
    %v481 = vunpack.c.l.b16 %v442
    %v482 = vunpack.c.l.b16 %v443
    %v483 = vunpack.c.l.b16 %v444
    %v484 = vunpack.c.l.b16 %v445
    %v485 = vunpack.c.l.b16 %v446
    %v486 = vunpack.c.l.b16 %v447
    %v487 = vunpack.c.l.b16 %v448
    %v488 = vunpack.c.l.b16 %v449
    %v489 = vunpack.c.l.b16 %v450
    %v490 = vunpack.c.l.b16 %v451
    %v491 = vunpack.c.l.b16 %v452
    %v492 = vunpack.c.l.b16 %v453
    %v493 = vunpack.c.l.b16 %v454
    %v494 = vunpack.c.l.b16 %v455
    %v495 = vunpack.c.l.b16 %v456
    %v496 = vunpack.c.l.b16 %v457
    %v497 = vpack.c.b16 %v482, %v481
    %v498 = vpack.c.b16 %v484, %v483
    %v499 = vpack.c.b16 %v486, %v485
    %v500 = vpack.c.b16 %v488, %v487
    %v501 = vpack.c.b16 %v490, %v489
    %v502 = vpack.c.b16 %v492, %v491
    %v503 = vpack.c.b16 %v494, %v493
    %v504 = vpack.c.b16 %v496, %v495
    %513 = vmatprep.subr.bf16.mxu0 0
    %514 = vmatpush1.bf16.msra.mxu0 %v497
    %515 = vmatprep.subr.bf16.mxu0 0
    %516 = vmatpush1.bf16.msra.mxu0 %v498
    %517 = vmatprep.subr.bf16.mxu0 0
    %518 = vmatpush1.bf16.msra.mxu0 %v499
    %519 = vmatprep.subr.bf16.mxu0 0
    %520 = vmatpush1.bf16.msra.mxu0 %v500
    %521 = vmatprep.subr.bf16.mxu0 0
    %522 = vmatpush1.bf16.msra.mxu0 %v501
    %523 = vmatprep.subr.bf16.mxu0 0
    %524 = vmatpush1.bf16.msra.mxu0 %v502
    %525 = vmatprep.subr.bf16.mxu0 0
    %526 = vmatpush1.bf16.msra.mxu0 %v503
    %527 = vmatprep.subr.bf16.mxu0 0
    %528 = vmatpush1.bf16.msra.mxu0 %v504
    %529 = vmatprep.subr.bf16.mxu0 0
    %530 = vmatpush1.bf16.msra.mxu0 0
    %531 = vmatprep.subr.bf16.mxu0 0
    %532 = vmatpush1.bf16.msra.mxu0 0
    %533 = vmatprep.subr.bf16.mxu0 0
    %534 = vmatpush1.bf16.msra.mxu0 0
    %535 = vmatprep.subr.bf16.mxu0 0
    %536 = vmatpush1.bf16.msra.mxu0 0
    %537 = vmatprep.subr.bf16.mxu0 0
    %538 = vmatpush1.bf16.msra.mxu0 0
    %539 = vmatprep.subr.bf16.mxu0 0
    %540 = vmatpush1.bf16.msra.mxu0 0
    %541 = vmatprep.subr.bf16.mxu0 0
    %542 = vmatpush1.bf16.msra.mxu0 0
    %543 = vmatprep.subr.bf16.mxu0 0
    %544 = vmatpush1.bf16.msra.mxu0 0
    %545 = vmatprep.mubr.bf16.mxu0 0
    %546 = vmatmul.mubr.bf16.gmra.mrb[0].mxu0 %v441
    %v547 = vpop.f32.mrb[0].mxu0
    %v548 = vadd.f32 %v463, %v547
    %v549 = vpop.f32.mrb[0].mxu0
    %v550 = vpop.f32.mrb[0].mxu0
    %v551 = vadd.f32 %v463, %v550
    %v552 = vpop.f32.mrb[0].mxu0
    %553 = vdwg.mxu0
    %v554 = vmax.f32 %v548, 0.0
    %v555 = vmax.f32 %v551, 0.0
    %v556 = vpack.c.bf16 %v555, %v554
    %v557 = vld [vmem:[#allocation10] sm:$0xf]
    %v558 = vld [vmem:[#allocation10 + $0x4] sm:$0xf]
    %v559 = vld [vmem:[#allocation10 + $0x8] sm:$0xf]
    %v560 = vld [vmem:[#allocation10 + $0xc] sm:$0xf]
    %v561 = vld [vmem:[#allocation10 + $0x10] sm:$0xf]
    %v562 = vld [vmem:[#allocation10 + $0x14] sm:$0xf]
    %v563 = vld [vmem:[#allocation10 + $0x18] sm:$0xf]
    %v564 = vld [vmem:[#allocation10 + $0x1c] sm:$0xf]
    %v565 = vld [vmem:[#allocation10 + $0x20] sm:$0xf]
    %v566 = vld [vmem:[#allocation10 + $0x24] sm:$0xf]
    %v567 = vld [vmem:[#allocation10 + $0x28] sm:$0xf]
    %v568 = vld [vmem:[#allocation10 + $0x2c] sm:$0xf]
    %v569 = vld [vmem:[#allocation10 + $0x30] sm:$0xf]
    %v570 = vld [vmem:[#allocation10 + $0x34] sm:$0xf]
    %v571 = vld [vmem:[#allocation10 + $0x38] sm:$0xf]
    %v572 = vld [vmem:[#allocation10 + $0x3c] sm:$0xf]
    %v573 = vld [vmem:[%s8] sm:$0x1]
    %v575 = vlaneseq
    %v576 = vshrl.u32 %v575, 7
    %v577 = vsub.s32 0, %v576
    %v578 = vrot.slane %v573, %v577
    %v596 = vunpack.c.l.b16 %v557
    %v597 = vunpack.c.l.b16 %v558
    %v598 = vunpack.c.l.b16 %v559
    %v599 = vunpack.c.l.b16 %v560
    %v600 = vunpack.c.l.b16 %v561
    %v601 = vunpack.c.l.b16 %v562
    %v602 = vunpack.c.l.b16 %v563
    %v603 = vunpack.c.l.b16 %v564
    %v604 = vunpack.c.l.b16 %v565
    %v605 = vunpack.c.l.b16 %v566
    %v606 = vunpack.c.l.b16 %v567
    %v607 = vunpack.c.l.b16 %v568
    %v608 = vunpack.c.l.b16 %v569
    %v609 = vunpack.c.l.b16 %v570
    %v610 = vunpack.c.l.b16 %v571
    %v611 = vunpack.c.l.b16 %v572
    %v612 = vpack.c.b16 %v597, %v596
    %v613 = vpack.c.b16 %v599, %v598
    %v614 = vpack.c.b16 %v601, %v600
    %v615 = vpack.c.b16 %v603, %v602
    %v616 = vpack.c.b16 %v605, %v604
    %v617 = vpack.c.b16 %v607, %v606
    %v618 = vpack.c.b16 %v609, %v608
    %v619 = vpack.c.b16 %v611, %v610
    %628 = vmatprep.subr.bf16.mxu0 0
    %629 = vmatpush1.bf16.msra.mxu0 %v612
    %630 = vmatprep.subr.bf16.mxu0 0
    %631 = vmatpush1.bf16.msra.mxu0 %v613
    %632 = vmatprep.subr.bf16.mxu0 0
    %633 = vmatpush1.bf16.msra.mxu0 %v614
    %634 = vmatprep.subr.bf16.mxu0 0
    %635 = vmatpush1.bf16.msra.mxu0 %v615
    %636 = vmatprep.subr.bf16.mxu0 0
    %637 = vmatpush1.bf16.msra.mxu0 %v616
    %638 = vmatprep.subr.bf16.mxu0 0
    %639 = vmatpush1.bf16.msra.mxu0 %v617
    %640 = vmatprep.subr.bf16.mxu0 0
    %641 = vmatpush1.bf16.msra.mxu0 %v618
    %642 = vmatprep.subr.bf16.mxu0 0
    %643 = vmatpush1.bf16.msra.mxu0 %v619
    %644 = vmatprep.subr.bf16.mxu0 0
    %645 = vmatpush1.bf16.msra.mxu0 0
    %646 = vmatprep.subr.bf16.mxu0 0
    %647 = vmatpush1.bf16.msra.mxu0 0
    %648 = vmatprep.subr.bf16.mxu0 0
    %649 = vmatpush1.bf16.msra.mxu0 0
    %650 = vmatprep.subr.bf16.mxu0 0
    %651 = vmatpush1.bf16.msra.mxu0 0
    %652 = vmatprep.subr.bf16.mxu0 0
    %653 = vmatpush1.bf16.msra.mxu0 0
    %654 = vmatprep.subr.bf16.mxu0 0
    %655 = vmatpush1.bf16.msra.mxu0 0
    %656 = vmatprep.subr.bf16.mxu0 0
    %657 = vmatpush1.bf16.msra.mxu0 0
    %658 = vmatprep.subr.bf16.mxu0 0
    %659 = vmatpush1.bf16.msra.mxu0 0
    %660 = vmatprep.mubr.bf16.mxu0 0
    %661 = vmatmul.mubr.bf16.gmra.mrb[0].mxu0 %v556
    %v662 = vpop.f32.mrb[0].mxu0
    %v663 = vadd.f32 %v578, %v662
    %v664 = vpop.f32.mrb[0].mxu0
    %v665 = vpop.f32.mrb[0].mxu0
    %v666 = vadd.f32 %v578, %v665
    %v667 = vpop.f32.mrb[0].mxu0
    %668 = vdwg.mxu0
    %669 = vst [vmem:[#allocation11] sm:$0xff] %v663
    %670 = vst [vmem:[#allocation11 + $0x8] sm:$0xff] %v666
    // Predicated region
    $region58: #{neural_net_forward.1} parent=1 // pred_check
      _
    $region59: #{neural_net_forward.1} parent=1 // pred_check_branch
      %672 = sbr.rel (0) target = $region61
    $region60: #{neural_net_forward.1} parent=1 // pred_region
      %s674 = ssub.s32 256, 256
      %675 = vsyncadd [#allocation4], %s674
      %s676 = sshll.u32 [#allocation11], 4
      %s677 = int_to_ptr.vmem [resolvable:$true] %s676
      %682 = dma.vmem_to_hbm [thread:$0]  %s677, 256, %s9, [#allocation4], 128, 128, 8
    $region61: #{neural_net_forward.1} parent=1 // pred_fallthru
      _
    // Predicated region
    $region62: #{neural_net_forward.1} parent=1 // pred_check
      _
    $region63: #{neural_net_forward.1} parent=1 // pred_check_branch
      %684 = sbr.rel (0) target = $region65
    $region64: #{neural_net_forward.1} parent=1 // pred_region
      %685 = dma.done [#allocation4], 256
    $region65: #{neural_net_forward.1} parent=1 // pred_fallthru
      _
    %686 = vsyncpa [#allocation3], 1
    %687 = vsyncpa [#allocation6], 1
    %688 = vsyncpa [#allocation9], 1
    %689 = vsyncpa [#allocation4], 1

</llo_original>
